<compile_context>
chip_gen: v7x
topology: tpu7x:2x2x1
jax: 0.10.0
libtpu: 0.0.40
codegen_flags: <defaults>
</compile_context>

<pallas_src>
import functools

import jax
import jax.numpy as jnp
from jax.experimental import pallas as pl
from jax.experimental.pallas import tpu as pltpu

IN_F = 9        # model in_features
HIDDEN = 100    # model hidden width
OUT_Q = 3       # model out_quantiles

HID_PAD = 128   # lane-aligned hidden width
OUT_PAD = 8     # small padded output width (block last dim == full array dim)


def _mlp_kernel(x_ref, w1_ref, b1_ref, w2_ref, b2_ref, w3_ref, b3_ref, o_ref):
    # All math in f32: the kernel is HBM-bound, so the MXU's f32 multi-pass
    # cost is hidden, and we keep full parity with the PyTorch f32 forward.
    h1 = jnp.dot(x_ref[...], w1_ref[...], preferred_element_type=jnp.float32)
    h1 = jnp.maximum(h1 + b1_ref[...], 0.0)
    h2 = jnp.dot(h1, w2_ref[...], preferred_element_type=jnp.float32)
    h2 = jnp.maximum(h2 + b2_ref[...], 0.0)
    h3 = jnp.dot(h2, w3_ref[...], preferred_element_type=jnp.float32)
    o_ref[...] = (h3 + b3_ref[...]).astype(o_ref.dtype)


def _round_up(n, m):
    return ((n + m - 1) // m) * m


def _pad2(a, rows, cols):
    return jnp.pad(a, ((0, rows - a.shape[0]), (0, cols - a.shape[1])))


@functools.partial(jax.jit, static_argnames=("max_block_m",))
def pulmonary_model_forward(x, params, *, max_block_m=1024):
    """x: (B, IN_F) float32.  params: dict w1,b1,w2,b2,w3,b3 with weights stored
    as (in, out) so the kernel computes x @ W + b (== PyTorch x @ W.T + b)."""
    assert max_block_m % 8 == 0
    B = x.shape[0]

    # --- batch tiling ------------------------------------------------------
    # Pad batch only to a sublane multiple, then pick tm so that
    #  * tm <= max_block_m,
    #  * there are >=2 grid steps whenever bp8 > 8 (v7x megacore + pipelining),
    #  * padding waste is at most a few sublane rows (no round_up(B, tm)).
    bp8 = _round_up(B, 8)
    n_steps = max(2, pl.cdiv(bp8, max_block_m))
    tm = min(max_block_m, _round_up(pl.cdiv(bp8, n_steps), 8))
    grid_m = pl.cdiv(bp8, tm)
    bp = grid_m * tm                      # final padded batch (small waste)

    # Only the batch dim of x is padded; features stay at 9, dtype stays f32.
    x_p = jnp.pad(x, ((0, bp - B), (0, 0)))

    # Weights/biases: pad once to lane-aligned widths, keep f32.
    w1 = _pad2(params["w1"], IN_F, HID_PAD)
    w2 = _pad2(params["w2"], HID_PAD, HID_PAD)
    w3 = _pad2(params["w3"], HID_PAD, OUT_PAD)
    b1 = _pad2(params["b1"], 1, HID_PAD)
    b2 = _pad2(params["b2"], 1, HID_PAD)
    b3 = _pad2(params["b3"], 1, OUT_PAD)

    resident = lambda i: (0, 0)           # weights/biases: same block every step

    flops = 2 * bp * (IN_F * HID_PAD + HID_PAD * HID_PAD + HID_PAD * OUT_PAD)
    bytes_accessed = 4 * (
        bp * (IN_F + OUT_PAD)                                   # x in, out
        + IN_F * HID_PAD + HID_PAD * HID_PAD + HID_PAD * OUT_PAD  # weights
        + 2 * HID_PAD + OUT_PAD)                                # biases

    out_padded = pl.pallas_call(
        _mlp_kernel,
        out_shape=jax.ShapeDtypeStruct((bp, OUT_PAD), jnp.float32),
        grid=(grid_m,),
        in_specs=[
            pl.BlockSpec((tm, IN_F), lambda i: (i, 0)),         # x tile (f32)
            pl.BlockSpec((IN_F, HID_PAD), resident),            # w1
            pl.BlockSpec((1, HID_PAD), resident),               # b1
            pl.BlockSpec((HID_PAD, HID_PAD), resident),         # w2
            pl.BlockSpec((1, HID_PAD), resident),               # b2
            pl.BlockSpec((HID_PAD, OUT_PAD), resident),         # w3
            pl.BlockSpec((1, OUT_PAD), resident),               # b3
        ],
        out_specs=pl.BlockSpec((tm, OUT_PAD), lambda i: (i, 0)),
        compiler_params=pltpu.CompilerParams(
            dimension_semantics=("parallel",),
        ),
        cost_estimate=pl.CostEstimate(
            flops=flops, transcendentals=0, bytes_accessed=bytes_accessed),
    )(x_p, w1, b1, w2, b2, w3, b3)

    return out_padded[:B, :OUT_Q]


def init_params(key, in_features=IN_F, hidden=HIDDEN, out_quantiles=OUT_Q):
    """Deterministic init mimicking PyTorch nn.Linear default (U(+/- 1/sqrt(fan_in))).
    Weights stored as (in, out) for the kernel's x @ W convention."""
    ks = jax.random.split(key, 6)

    def lin(kw, kb, fan_in, fan_out):
        bound = 1.0 / jnp.sqrt(jnp.float32(fan_in))
        w = jax.random.uniform(kw, (fan_in, fan_out), jnp.float32, -bound, bound)
        b = jax.random.uniform(kb, (1, fan_out), jnp.float32, -bound, bound)
        return w, b

    w1, b1 = lin(ks[0], ks[1], in_features, hidden)
    w2, b2 = lin(ks[2], ks[3], hidden, hidden)
    w3, b3 = lin(ks[4], ks[5], hidden, out_quantiles)
    return {"w1": w1, "b1": b1, "w2": w2, "b2": b2, "w3": w3, "b3": b3}


def _reference(x, p):
    """Pure-f32 reference matching the PyTorch forward."""
    h1 = jnp.maximum(x @ p["w1"] + p["b1"], 0.0)
    h2 = jnp.maximum(h1 @ p["w2"] + p["b2"], 0.0)
    return h2 @ p["w3"] + p["b3"]


if __name__ == "__main__":
    key = jax.random.PRNGKey(0)
    k_x, k_x2, k_p = jax.random.split(key, 3)

    params = init_params(k_p)

    # Small case (single 8-row tile, grid=(1,)).
    batch = 8
    x = jax.random.normal(k_x, (batch, IN_F), jnp.float32)
    out = jax.block_until_ready(pulmonary_model_forward(x, params))
    ref = _reference(x, params)
    assert out.shape == (batch, OUT_Q)
    assert jnp.allclose(out, ref, atol=2e-2, rtol=2e-2), "small-batch mismatch"

    # Non-multiple-of-tile batch: exercises the tm/grid selection (>=2 steps)
    # and the batch zero-padding path.
    batch2 = 200
    x2 = jax.random.normal(k_x2, (batch2, IN_F), jnp.float32)
    out2 = jax.block_until_ready(pulmonary_model_forward(x2, params))
    ref2 = _reference(x2, params)
    assert out2.shape == (batch2, OUT_Q)
    assert jnp.allclose(out2, ref2, atol=2e-2, rtol=2e-2), "tiled-batch mismatch"

    print("KERNEL_OK")
</pallas_src>

<mosaic_0001>
module attributes {stable_mosaic.version = 11 : i64} {
  func.func @_mlp_kernel(%arg0: i32, %arg1: memref<8x9xf32, #tpu.memory_space<vmem>>, %arg2: memref<9x128xf32, #tpu.memory_space<vmem>>, %arg3: memref<1x128xf32, #tpu.memory_space<vmem>>, %arg4: memref<128x128xf32, #tpu.memory_space<vmem>>, %arg5: memref<1x128xf32, #tpu.memory_space<vmem>>, %arg6: memref<128x8xf32, #tpu.memory_space<vmem>>, %arg7: memref<1x8xf32, #tpu.memory_space<vmem>>, %arg8: memref<8x8xf32, #tpu.memory_space<vmem>>) attributes {dimension_semantics = [#tpu.dimension_semantics<parallel>], iteration_bounds = array<i64: 1>, scalar_prefetch = 0 : i64, scratch_operands = 0 : i64, tpu.core_type = #tpu.core_type<tc>, window_params = [{transform_indices = @transform_0, window_bounds = array<i64: 8, 9>}, {pipeline_mode = #tpu.pipeline_mode<synchronous>, transform_indices = @transform_1, window_bounds = array<i64: 9, 128>}, {pipeline_mode = #tpu.pipeline_mode<synchronous>, transform_indices = @transform_2, window_bounds = array<i64: 1, 128>}, {pipeline_mode = #tpu.pipeline_mode<synchronous>, transform_indices = @transform_3, window_bounds = array<i64: 128, 128>}, {pipeline_mode = #tpu.pipeline_mode<synchronous>, transform_indices = @transform_4, window_bounds = array<i64: 1, 128>}, {pipeline_mode = #tpu.pipeline_mode<synchronous>, transform_indices = @transform_5, window_bounds = array<i64: 128, 8>}, {pipeline_mode = #tpu.pipeline_mode<synchronous>, transform_indices = @transform_6, window_bounds = array<i64: 1, 8>}, {transform_indices = @transform_7, window_bounds = array<i64: 8, 8>}]} {
    %c0 = arith.constant 0 : index
    %c0_0 = arith.constant 0 : index
    %0 = vector.load %arg1[%c0, %c0_0] : memref<8x9xf32, #tpu.memory_space<vmem>>, vector<8x9xf32>
    %c0_1 = arith.constant 0 : index
    %c0_2 = arith.constant 0 : index
    %1 = vector.load %arg2[%c0_1, %c0_2] : memref<9x128xf32, #tpu.memory_space<vmem>>, vector<9x128xf32>
    %cst = arith.constant dense<0.000000e+00> : vector<8x128xf32>
    %2 = tpu.matmul %0, %1, %cst {dimension_numbers = #tpu.dot_dimension_numbers<[1], [0], [0], [1], [0, 0, 1, 1], [], []>} : vector<8x9xf32>, vector<9x128xf32>, vector<8x128xf32> -> vector<8x128xf32>
    %c0_3 = arith.constant 0 : index
    %c0_4 = arith.constant 0 : index
    %3 = vector.load %arg3[%c0_3, %c0_4] : memref<1x128xf32, #tpu.memory_space<vmem>>, vector<1x128xf32>
    %4 = vector.broadcast %3 : vector<1x128xf32> to vector<8x128xf32>
    %5 = arith.addf %2, %4 : vector<8x128xf32>
    %cst_5 = arith.constant 0.000000e+00 : f32
    %6 = vector.broadcast %cst_5 : f32 to vector<8x128xf32>
    %7 = arith.maximumf %5, %6 : vector<8x128xf32>
    %c0_6 = arith.constant 0 : index
    %c0_7 = arith.constant 0 : index
    %8 = vector.load %arg4[%c0_6, %c0_7] : memref<128x128xf32, #tpu.memory_space<vmem>>, vector<128x128xf32>
    %cst_8 = arith.constant dense<0.000000e+00> : vector<8x128xf32>
    %9 = tpu.matmul %7, %8, %cst_8 {dimension_numbers = #tpu.dot_dimension_numbers<[1], [0], [0], [1], [0, 0, 1, 1], [], []>} : vector<8x128xf32>, vector<128x128xf32>, vector<8x128xf32> -> vector<8x128xf32>
    %c0_9 = arith.constant 0 : index
    %c0_10 = arith.constant 0 : index
    %10 = vector.load %arg5[%c0_9, %c0_10] : memref<1x128xf32, #tpu.memory_space<vmem>>, vector<1x128xf32>
    %11 = vector.broadcast %10 : vector<1x128xf32> to vector<8x128xf32>
    %12 = arith.addf %9, %11 : vector<8x128xf32>
    %cst_11 = arith.constant 0.000000e+00 : f32
    %13 = vector.broadcast %cst_11 : f32 to vector<8x128xf32>
    %14 = arith.maximumf %12, %13 : vector<8x128xf32>
    %c0_12 = arith.constant 0 : index
    %c0_13 = arith.constant 0 : index
    %15 = vector.load %arg6[%c0_12, %c0_13] : memref<128x8xf32, #tpu.memory_space<vmem>>, vector<128x8xf32>
    %cst_14 = arith.constant dense<0.000000e+00> : vector<8x8xf32>
    %16 = tpu.matmul %14, %15, %cst_14 {dimension_numbers = #tpu.dot_dimension_numbers<[1], [0], [0], [1], [0, 0, 1, 1], [], []>} : vector<8x128xf32>, vector<128x8xf32>, vector<8x8xf32> -> vector<8x8xf32>
    %c0_15 = arith.constant 0 : index
    %c0_16 = arith.constant 0 : index
    %17 = vector.load %arg7[%c0_15, %c0_16] : memref<1x8xf32, #tpu.memory_space<vmem>>, vector<1x8xf32>
    %18 = vector.broadcast %17 : vector<1x8xf32> to vector<8x8xf32>
    %19 = arith.addf %16, %18 : vector<8x8xf32>
    %c0_17 = arith.constant 0 : index
    %c0_18 = arith.constant 0 : index
    %20 = vector.load %arg8[%c0_17, %c0_18] : memref<8x8xf32, #tpu.memory_space<vmem>>, vector<8x8xf32>
    tpu.vector_store %arg8[%c0_17, %c0_18], %19 {strides = array<i32>} : memref<8x8xf32, #tpu.memory_space<vmem>>, vector<8x8xf32>,
    return
  }
  func.func @transform_0(%arg0: i32) -> (i32, i32) {
    %c0_i32 = arith.constant 0 : i32
    %c0_i32_0 = arith.constant 0 : i32
    return %arg0, %c0_i32 : i32, i32
  }
  func.func @transform_1(%arg0: i32) -> (i32, i32) {
    %c0_i32 = arith.constant 0 : i32
    %c0_i32_0 = arith.constant 0 : i32
    %c0_i32_1 = arith.constant 0 : i32
    return %c0_i32, %c0_i32_0 : i32, i32
  }
  func.func @transform_2(%arg0: i32) -> (i32, i32) {
    %c0_i32 = arith.constant 0 : i32
    %c0_i32_0 = arith.constant 0 : i32
    %c0_i32_1 = arith.constant 0 : i32
    return %c0_i32, %c0_i32_0 : i32, i32
  }
  func.func @transform_3(%arg0: i32) -> (i32, i32) {
    %c0_i32 = arith.constant 0 : i32
    %c0_i32_0 = arith.constant 0 : i32
    %c0_i32_1 = arith.constant 0 : i32
    return %c0_i32, %c0_i32_0 : i32, i32
  }
  func.func @transform_4(%arg0: i32) -> (i32, i32) {
    %c0_i32 = arith.constant 0 : i32
    %c0_i32_0 = arith.constant 0 : i32
    %c0_i32_1 = arith.constant 0 : i32
    return %c0_i32, %c0_i32_0 : i32, i32
  }
  func.func @transform_5(%arg0: i32) -> (i32, i32) {
    %c0_i32 = arith.constant 0 : i32
    %c0_i32_0 = arith.constant 0 : i32
    %c0_i32_1 = arith.constant 0 : i32
    return %c0_i32, %c0_i32_0 : i32, i32
  }
  func.func @transform_6(%arg0: i32) -> (i32, i32) {
    %c0_i32 = arith.constant 0 : i32
    %c0_i32_0 = arith.constant 0 : i32
    %c0_i32_1 = arith.constant 0 : i32
    return %c0_i32, %c0_i32_0 : i32, i32
  }
  func.func @transform_7(%arg0: i32) -> (i32, i32) {
    %c0_i32 = arith.constant 0 : i32
    %c0_i32_0 = arith.constant 0 : i32
    return %arg0, %c0_i32 : i32, i32
  }
}

</mosaic_0001>

<llo_original>
// kernel: pulmonary_model_forward.1
$region0: #{pulmonary_model_forward.1}
  #allocation0 [shape = 'u32[]', space=smem, size = 0x4, offset = 0x4, fixed_abs, tag = 'smem constant byte address 0x4 - core index']
  #allocation1 [shape = 'u32[144,128]{1,0:T(1,128)}', space=vmem, size = 0x12000, scoped, tag = 'internal scratch']
  %s0 = inlined_call_operand.vmem [shape: f32[8,9], index: 0, kind: input, shape index: {}]
  %s1 = inlined_call_operand.vmem [shape: f32[9,128], index: 1, kind: input, shape index: {}]
  %s2 = inlined_call_operand.vmem [shape: f32[1,128], index: 2, kind: input, shape index: {}]
  %s3 = inlined_call_operand.vmem [shape: f32[128,128], index: 3, kind: input, shape index: {}]
  %s4 = inlined_call_operand.vmem [shape: f32[1,128], index: 4, kind: input, shape index: {}]
  %s5 = inlined_call_operand.vmem [shape: f32[128,8], index: 5, kind: input, shape index: {}]
  %s6 = inlined_call_operand.vmem [shape: f32[1,8], index: 6, kind: input, shape index: {}]
  %s7 = inlined_call_operand.vmem [shape: f32[8,8], index: 7, kind: output, shape index: {}]
  %s8 = sld [smem:[#allocation0]]
  $region38: #{pulmonary_model_forward.1} parent=0
    _
  %s10 = ssub.s32 1, %s8
  %s11 = scalar_select 0, %s10, %s8
  // Predicated region
  $region2: #{pulmonary_model_forward.1} parent=0 // pred_check
    _
  $region3: #{pulmonary_model_forward.1} parent=0 // pred_check_branch
    %13 = sbr.rel (0) target = $region5
  $region4: #{pulmonary_model_forward.1} parent=0 // pred_region
    _
  $region5: #{pulmonary_model_forward.1} parent=0 // pred_fallthru
    _
  // Predicated region
  $region6: #{pulmonary_model_forward.1} parent=0 // pred_check
    _
  $region7: #{pulmonary_model_forward.1} parent=0 // pred_check_branch
    %15 = sbr.rel (0) target = $region9
  $region8: #{pulmonary_model_forward.1} parent=0 // pred_region
    _
  $region9: #{pulmonary_model_forward.1} parent=0 // pred_fallthru
    _
  // Predicated region
  $region10: #{pulmonary_model_forward.1} parent=0 // pred_check
    _
  $region11: #{pulmonary_model_forward.1} parent=0 // pred_check_branch
    %17 = sbr.rel (0) target = $region13
  $region12: #{pulmonary_model_forward.1} parent=0 // pred_region
    _
  $region13: #{pulmonary_model_forward.1} parent=0 // pred_fallthru
    _
  // Predicated region
  $region14: #{pulmonary_model_forward.1} parent=0 // pred_check
    _
  $region15: #{pulmonary_model_forward.1} parent=0 // pred_check_branch
    %19 = sbr.rel (0) target = $region17
  $region16: #{pulmonary_model_forward.1} parent=0 // pred_region
    _
  $region17: #{pulmonary_model_forward.1} parent=0 // pred_fallthru
    _
  // Predicated region
  $region18: #{pulmonary_model_forward.1} parent=0 // pred_check
    _
  $region19: #{pulmonary_model_forward.1} parent=0 // pred_check_branch
    %21 = sbr.rel (0) target = $region21
  $region20: #{pulmonary_model_forward.1} parent=0 // pred_region
    _
  $region21: #{pulmonary_model_forward.1} parent=0 // pred_fallthru
    _
  // Predicated region
  $region22: #{pulmonary_model_forward.1} parent=0 // pred_check
    _
  $region23: #{pulmonary_model_forward.1} parent=0 // pred_check_branch
    %23 = sbr.rel (0) target = $region25
  $region24: #{pulmonary_model_forward.1} parent=0 // pred_region
    _
  $region25: #{pulmonary_model_forward.1} parent=0 // pred_fallthru
    _
  // Predicated region
  $region26: #{pulmonary_model_forward.1} parent=0 // pred_check
    _
  $region27: #{pulmonary_model_forward.1} parent=0 // pred_check_branch
    %25 = sbr.rel (0) target = $region29
  $region28: #{pulmonary_model_forward.1} parent=0 // pred_region
    _
  $region29: #{pulmonary_model_forward.1} parent=0 // pred_fallthru
    _
  %v26 = vld [vmem:[%s0] sm:$0xff]
  %v27 = vld [vmem:[%s1] sm:$0xff]
  %v28 = vld [vmem:[%s1 + $0x8] sm:$0x1]
  %v29 = vld [vmem:[%s2] sm:$0x1]
  %v31 = vlaneseq
  %v32 = vshrl.u32 %v31, 7
  %v33 = vsub.s32 0, %v32
  %v34 = vrot.slane %v29, %v33
  %vm36 = vcmask 72704
  %v38 = vsel %vm36, %v26, 0
  %vm40 = vcmask 1040384
  %v42 = vsel %vm40, %v28, 0
  %44 = vmatprep.subr.mxu0 0.0
  %45 = vmatpush1.msra.mxu0 %v27
  %46 = vmatprep.subr.mxu0 0.0
  %47 = vmatpush1.msra.mxu0 %v42
  %48 = vmatprep.subr.mxu0 0.0
  %49 = vmatpush1.msra.mxu0 0.0
  %50 = vmatprep.subr.mxu0 0.0
  %51 = vmatpush1.msra.mxu0 0.0
  %52 = vmatprep.subr.mxu0 0.0
  %53 = vmatpush1.msra.mxu0 0.0
  %54 = vmatprep.subr.mxu0 0.0
  %55 = vmatpush1.msra.mxu0 0.0
  %56 = vmatprep.subr.mxu0 0.0
  %57 = vmatpush1.msra.mxu0 0.0
  %58 = vmatprep.subr.mxu0 0.0
  %59 = vmatpush1.msra.mxu0 0.0
  %60 = vmatprep.subr.mxu0 0.0
  %61 = vmatpush1.msra.mxu0 0.0
  %62 = vmatprep.subr.mxu0 0.0
  %63 = vmatpush1.msra.mxu0 0.0
  %64 = vmatprep.subr.mxu0 0.0
  %65 = vmatpush1.msra.mxu0 0.0
  %66 = vmatprep.subr.mxu0 0.0
  %67 = vmatpush1.msra.mxu0 0.0
  %68 = vmatprep.subr.mxu0 0.0
  %69 = vmatpush1.msra.mxu0 0.0
  %70 = vmatprep.subr.mxu0 0.0
  %71 = vmatpush1.msra.mxu0 0.0
  %72 = vmatprep.subr.mxu0 0.0
  %73 = vmatpush1.msra.mxu0 0.0
  %74 = vmatprep.subr.mxu0 0.0
  %75 = vmatpush1.msra.mxu0 0.0
  %76 = vmatprep.subr.mxu0 0.0
  %77 = vmatpush1.msra.mxu0 0.0
  %78 = vmatprep.subr.mxu0 0.0
  %79 = vmatpush1.msra.mxu0 0.0
  %80 = vmatprep.subr.mxu0 0.0
  %81 = vmatpush1.msra.mxu0 0.0
  %82 = vmatprep.subr.mxu0 0.0
  %83 = vmatpush1.msra.mxu0 0.0
  %84 = vmatprep.subr.mxu0 0.0
  %85 = vmatpush1.msra.mxu0 0.0
  %86 = vmatprep.subr.mxu0 0.0
  %87 = vmatpush1.msra.mxu0 0.0
  %88 = vmatprep.subr.mxu0 0.0
  %89 = vmatpush1.msra.mxu0 0.0
  %90 = vmatprep.subr.mxu0 0.0
  %91 = vmatpush1.msra.mxu0 0.0
  %92 = vmatprep.subr.mxu0 0.0
  %93 = vmatpush1.msra.mxu0 0.0
  %94 = vmatprep.subr.mxu0 0.0
  %95 = vmatpush1.msra.mxu0 0.0
  %96 = vmatprep.subr.mxu0 0.0
  %97 = vmatpush1.msra.mxu0 0.0
  %98 = vmatprep.subr.mxu0 0.0
  %99 = vmatpush1.msra.mxu0 0.0
  %100 = vmatprep.subr.mxu0 0.0
  %101 = vmatpush1.msra.mxu0 0.0
  %102 = vmatprep.subr.mxu0 0.0
  %103 = vmatpush1.msra.mxu0 0.0
  %104 = vmatprep.subr.mxu0 0.0
  %105 = vmatpush1.msra.mxu0 0.0
  %106 = vmatprep.subr.mxu0 0.0
  %107 = vmatpush1.msra.mxu0 0.0
  %108 = vmatprep.mubr.f32.mxu0 0.0
  %109 = vmatmul.mubr.f32.gmra.mrb[0].mxu0 %v38
  %v110 = vpop.f32.mrb[0].mxu0
  %v111 = vadd.f32 %v34, %v110
  %v112 = vpop.f32.mrb[0].mxu0
  %113 = vdwg.mxu0
  %v114 = vmax.f32 %v111, 0.0
  %v115 = vld [vmem:[%s3] sm:$0xff]
  %v116 = vld [vmem:[%s3 + $0x8] sm:$0xff]
  %v117 = vld [vmem:[%s3 + $0x10] sm:$0xff]
  %v118 = vld [vmem:[%s3 + $0x18] sm:$0xff]
  %v119 = vld [vmem:[%s3 + $0x20] sm:$0xff]
  %v120 = vld [vmem:[%s3 + $0x28] sm:$0xff]
  %v121 = vld [vmem:[%s3 + $0x30] sm:$0xff]
  %v122 = vld [vmem:[%s3 + $0x38] sm:$0xff]
  %v123 = vld [vmem:[%s3 + $0x40] sm:$0xff]
  %v124 = vld [vmem:[%s3 + $0x48] sm:$0xff]
  %v125 = vld [vmem:[%s3 + $0x50] sm:$0xff]
  %v126 = vld [vmem:[%s3 + $0x58] sm:$0xff]
  %v127 = vld [vmem:[%s3 + $0x60] sm:$0xff]
  %v128 = vld [vmem:[%s3 + $0x68] sm:$0xff]
  %v129 = vld [vmem:[%s3 + $0x70] sm:$0xff]
  %v130 = vld [vmem:[%s3 + $0x78] sm:$0xff]
  %v131 = vld [vmem:[%s4] sm:$0x1]
  %v133 = vlaneseq
  %v134 = vshrl.u32 %v133, 7
  %v135 = vsub.s32 0, %v134
  %v136 = vrot.slane %v131, %v135
  %138 = vmatprep.subr.mxu0 0.0
  %139 = vmatpush1.msra.mxu0 %v115
  %140 = vmatprep.subr.mxu0 0.0
  %141 = vmatpush1.msra.mxu0 %v116
  %142 = vmatprep.subr.mxu0 0.0
  %143 = vmatpush1.msra.mxu0 %v117
  %144 = vmatprep.subr.mxu0 0.0
  %145 = vmatpush1.msra.mxu0 %v118
  %146 = vmatprep.subr.mxu0 0.0
  %147 = vmatpush1.msra.mxu0 %v119
  %148 = vmatprep.subr.mxu0 0.0
  %149 = vmatpush1.msra.mxu0 %v120
  %150 = vmatprep.subr.mxu0 0.0
  %151 = vmatpush1.msra.mxu0 %v121
  %152 = vmatprep.subr.mxu0 0.0
  %153 = vmatpush1.msra.mxu0 %v122
  %154 = vmatprep.subr.mxu0 0.0
  %155 = vmatpush1.msra.mxu0 %v123
  %156 = vmatprep.subr.mxu0 0.0
  %157 = vmatpush1.msra.mxu0 %v124
  %158 = vmatprep.subr.mxu0 0.0
  %159 = vmatpush1.msra.mxu0 %v125
  %160 = vmatprep.subr.mxu0 0.0
  %161 = vmatpush1.msra.mxu0 %v126
  %162 = vmatprep.subr.mxu0 0.0
  %163 = vmatpush1.msra.mxu0 %v127
  %164 = vmatprep.subr.mxu0 0.0
  %165 = vmatpush1.msra.mxu0 %v128
  %166 = vmatprep.subr.mxu0 0.0
  %167 = vmatpush1.msra.mxu0 %v129
  %168 = vmatprep.subr.mxu0 0.0
  %169 = vmatpush1.msra.mxu0 %v130
  %170 = vmatprep.subr.mxu0 0.0
  %171 = vmatpush1.msra.mxu0 0.0
  %172 = vmatprep.subr.mxu0 0.0
  %173 = vmatpush1.msra.mxu0 0.0
  %174 = vmatprep.subr.mxu0 0.0
  %175 = vmatpush1.msra.mxu0 0.0
  %176 = vmatprep.subr.mxu0 0.0
  %177 = vmatpush1.msra.mxu0 0.0
  %178 = vmatprep.subr.mxu0 0.0
  %179 = vmatpush1.msra.mxu0 0.0
  %180 = vmatprep.subr.mxu0 0.0
  %181 = vmatpush1.msra.mxu0 0.0
  %182 = vmatprep.subr.mxu0 0.0
  %183 = vmatpush1.msra.mxu0 0.0
  %184 = vmatprep.subr.mxu0 0.0
  %185 = vmatpush1.msra.mxu0 0.0
  %186 = vmatprep.subr.mxu0 0.0
  %187 = vmatpush1.msra.mxu0 0.0
  %188 = vmatprep.subr.mxu0 0.0
  %189 = vmatpush1.msra.mxu0 0.0
  %190 = vmatprep.subr.mxu0 0.0
  %191 = vmatpush1.msra.mxu0 0.0
  %192 = vmatprep.subr.mxu0 0.0
  %193 = vmatpush1.msra.mxu0 0.0
  %194 = vmatprep.subr.mxu0 0.0
  %195 = vmatpush1.msra.mxu0 0.0
  %196 = vmatprep.subr.mxu0 0.0
  %197 = vmatpush1.msra.mxu0 0.0
  %198 = vmatprep.subr.mxu0 0.0
  %199 = vmatpush1.msra.mxu0 0.0
  %200 = vmatprep.subr.mxu0 0.0
  %201 = vmatpush1.msra.mxu0 0.0
  %202 = vmatprep.mubr.f32.mxu0 0.0
  %203 = vmatmul.mubr.f32.gmra.mrb[0].mxu0 %v114
  %v204 = vpop.f32.mrb[0].mxu0
  %v205 = vadd.f32 %v136, %v204
  %v206 = vpop.f32.mrb[0].mxu0
  %207 = vdwg.mxu0
  %v208 = vmax.f32 %v205, 0.0
  %v209 = vld [vmem:[%s5] sm:$0xff]
  %v210 = vld [vmem:[%s5 + $0x8] sm:$0xff]
  %v211 = vld [vmem:[%s5 + $0x10] sm:$0xff]
  %v212 = vld [vmem:[%s5 + $0x18] sm:$0xff]
  %v213 = vld [vmem:[%s5 + $0x20] sm:$0xff]
  %v214 = vld [vmem:[%s5 + $0x28] sm:$0xff]
  %v215 = vld [vmem:[%s5 + $0x30] sm:$0xff]
  %v216 = vld [vmem:[%s5 + $0x38] sm:$0xff]
  %v217 = vld [vmem:[%s5 + $0x40] sm:$0xff]
  %v218 = vld [vmem:[%s5 + $0x48] sm:$0xff]
  %v219 = vld [vmem:[%s5 + $0x50] sm:$0xff]
  %v220 = vld [vmem:[%s5 + $0x58] sm:$0xff]
  %v221 = vld [vmem:[%s5 + $0x60] sm:$0xff]
  %v222 = vld [vmem:[%s5 + $0x68] sm:$0xff]
  %v223 = vld [vmem:[%s5 + $0x70] sm:$0xff]
  %v224 = vld [vmem:[%s5 + $0x78] sm:$0xff]
  %v225 = vld [vmem:[%s6] sm:$0x1]
  %v227 = vlaneseq
  %v228 = vshrl.u32 %v227, 7
  %v229 = vsub.s32 0, %v228
  %v230 = vrot.slane %v225, %v229
  %232 = vmatprep.subr.mxu0 0.0
  %233 = vmatpush1.msra.mxu0 %v209
  %234 = vmatprep.subr.mxu0 0.0
  %235 = vmatpush1.msra.mxu0 %v210
  %236 = vmatprep.subr.mxu0 0.0
  %237 = vmatpush1.msra.mxu0 %v211
  %238 = vmatprep.subr.mxu0 0.0
  %239 = vmatpush1.msra.mxu0 %v212
  %240 = vmatprep.subr.mxu0 0.0
  %241 = vmatpush1.msra.mxu0 %v213
  %242 = vmatprep.subr.mxu0 0.0
  %243 = vmatpush1.msra.mxu0 %v214
  %244 = vmatprep.subr.mxu0 0.0
  %245 = vmatpush1.msra.mxu0 %v215
  %246 = vmatprep.subr.mxu0 0.0
  %247 = vmatpush1.msra.mxu0 %v216
  %248 = vmatprep.subr.mxu0 0.0
  %249 = vmatpush1.msra.mxu0 %v217
  %250 = vmatprep.subr.mxu0 0.0
  %251 = vmatpush1.msra.mxu0 %v218
  %252 = vmatprep.subr.mxu0 0.0
  %253 = vmatpush1.msra.mxu0 %v219
  %254 = vmatprep.subr.mxu0 0.0
  %255 = vmatpush1.msra.mxu0 %v220
  %256 = vmatprep.subr.mxu0 0.0
  %257 = vmatpush1.msra.mxu0 %v221
  %258 = vmatprep.subr.mxu0 0.0
  %259 = vmatpush1.msra.mxu0 %v222
  %260 = vmatprep.subr.mxu0 0.0
  %261 = vmatpush1.msra.mxu0 %v223
  %262 = vmatprep.subr.mxu0 0.0
  %263 = vmatpush1.msra.mxu0 %v224
  %264 = vmatprep.subr.mxu0 0.0
  %265 = vmatpush1.msra.mxu0 0.0
  %266 = vmatprep.subr.mxu0 0.0
  %267 = vmatpush1.msra.mxu0 0.0
  %268 = vmatprep.subr.mxu0 0.0
  %269 = vmatpush1.msra.mxu0 0.0
  %270 = vmatprep.subr.mxu0 0.0
  %271 = vmatpush1.msra.mxu0 0.0
  %272 = vmatprep.subr.mxu0 0.0
  %273 = vmatpush1.msra.mxu0 0.0
  %274 = vmatprep.subr.mxu0 0.0
  %275 = vmatpush1.msra.mxu0 0.0
  %276 = vmatprep.subr.mxu0 0.0
  %277 = vmatpush1.msra.mxu0 0.0
  %278 = vmatprep.subr.mxu0 0.0
  %279 = vmatpush1.msra.mxu0 0.0
  %280 = vmatprep.subr.mxu0 0.0
  %281 = vmatpush1.msra.mxu0 0.0
  %282 = vmatprep.subr.mxu0 0.0
  %283 = vmatpush1.msra.mxu0 0.0
  %284 = vmatprep.subr.mxu0 0.0
  %285 = vmatpush1.msra.mxu0 0.0
  %286 = vmatprep.subr.mxu0 0.0
  %287 = vmatpush1.msra.mxu0 0.0
  %288 = vmatprep.subr.mxu0 0.0
  %289 = vmatpush1.msra.mxu0 0.0
  %290 = vmatprep.subr.mxu0 0.0
  %291 = vmatpush1.msra.mxu0 0.0
  %292 = vmatprep.subr.mxu0 0.0
  %293 = vmatpush1.msra.mxu0 0.0
  %294 = vmatprep.subr.mxu0 0.0
  %295 = vmatpush1.msra.mxu0 0.0
  %296 = vmatprep.mubr.f32.mxu0 0.0
  %297 = vmatmul.mubr.f32.gmra.mrb[0].mxu0 %v208
  %v298 = vpop.f32.mrb[0].mxu0
  %v299 = vadd.f32 %v230, %v298
  %v300 = vpop.f32.mrb[0].mxu0
  %301 = vdwg.mxu0
  %vm302 = vcmask 64512
  %303 = vst.msk [vmem:[%s7] sm:$0xff] %vm302, %v299
  // Predicated region
  $region30: #{pulmonary_model_forward.1} parent=0 // pred_check
    _
  $region31: #{pulmonary_model_forward.1} parent=0 // pred_check_branch
    %305 = sbr.rel (0) target = $region33
  $region32: #{pulmonary_model_forward.1} parent=0 // pred_region
    _
  $region33: #{pulmonary_model_forward.1} parent=0 // pred_fallthru
    _
  // Predicated region
  $region34: #{pulmonary_model_forward.1} parent=0 // pred_check
    _
  $region35: #{pulmonary_model_forward.1} parent=0 // pred_check_branch
    %307 = sbr.rel (0) target = $region37
  $region36: #{pulmonary_model_forward.1} parent=0 // pred_region
    _
  $region37: #{pulmonary_model_forward.1} parent=0 // pred_fallthru
    _

</llo_original>
